<compile_context>
chip_gen: v5e
topology: v5e:2x2
jax: 0.10.0
libtpu: 0.0.40
codegen_flags: <defaults>
</compile_context>

<pallas_src>
import jax
import jax.numpy as jnp
from jax.experimental import pallas as pl
from jax.experimental.pallas import tpu as pltpu


def _attentive_pool_kernel(x_ref, w_ref, o_ref, m_sc, l_sc, acc_sc):
    """x_ref: (bb, bt, D); w_ref: (1, D); o_ref: (bb, D).

    Scratch (persists across the T grid axis): m_sc/l_sc (bb, 1) f32, acc_sc (bb, D) f32.
    """
    t_idx = pl.program_id(1)

    @pl.when(t_idx == 0)
    def _():
        m_sc[...] = jnp.full_like(m_sc, -jnp.inf)
        l_sc[...] = jnp.zeros_like(l_sc)
        acc_sc[...] = jnp.zeros_like(acc_sc)

    x = x_ref[...]                        # (bb, bt, D), native dtype (f32 or bf16)
    w = w_ref[...]                        # (1, D), same dtype -> broadcasts over (bb, bt, D)

    # Attention scores: Linear(D -> 1) == lane reduction over D, f32 accumulation.
    # keepdims keeps T on the sublane axis (no relayout when multiplying back into x).
    scores = jnp.sum(x * w, axis=-1, keepdims=True, dtype=jnp.float32)   # (bb, bt, 1)

    # Online-softmax update (numerically stable across T tiles).
    m_prev = m_sc[...]                                  # (bb, 1)
    m_new = jnp.maximum(m_prev, jnp.max(scores, axis=1))
    alpha = jnp.exp(m_prev - m_new)                     # rescale for previous tiles

    e = jnp.exp(scores - m_new[:, :, None])             # (bb, bt, 1) un-normalized weights
    l_sc[...] = alpha * l_sc[...] + jnp.sum(e, axis=1)  # (bb, 1)

    # Un-normalized weighted pooling over this T block; accumulate in f32.
    pooled = jnp.sum(x * e.astype(x.dtype), axis=1, dtype=jnp.float32)   # (bb, D)
    acc_sc[...] = alpha * acc_sc[...] + pooled
    m_sc[...] = m_new

    @pl.when(t_idx == pl.num_programs(1) - 1)
    def _():
        # Deferred softmax normalization: one (bb, D)-wide multiply, EUP reciprocal.
        inv_l = pl.reciprocal(l_sc[...], approx=True)
        o_ref[...] = (acc_sc[...] * inv_l).astype(o_ref.dtype)


def _largest_aligned_divisor(total, target, align=8):
    """Largest multiple of `align` that divides `total` and is <= target (else `total`)."""
    if target >= total:
        return total
    d = max(align, (target // align) * align)
    while d >= align:
        if total % d == 0:
            return d
        d -= align
    # TODO(synk): T not divisible by 8 and larger than the budget -> would need a masked
    # ragged tail block; fall back to the full extent (guard assert below still applies).
    return total


def attentive_pooling(x, w, b=None, *, block_b=None, block_t=None, vmem_limit_bytes=None):
    """x: (B, T, D); w: (D,) Linear(D,1) weight; b: ignored (softmax shift-invariance).

    Returns (B, D).
    """
    del b  # softmax over T is shift-invariant -> the Linear bias cannot affect the output.
    B, T, D = x.shape
    itemsize = x.dtype.itemsize
    w2 = jnp.asarray(w).astype(x.dtype).reshape(1, D)   # keep weight in x's dtype

    # Generation-aware budgets: v5e/v6e have 128 MiB VMEM, v7x has 64 MiB per TensorCore.
    try:
        vmem_cap = int(pltpu.get_tpu_info().vmem_capacity_bytes)
    except Exception:
        vmem_cap = 64 * 1024 * 1024
    if vmem_cap >= 96 * 1024 * 1024:          # v5e / v6e
        x_budget = 8 * 1024 * 1024            # x bytes per block
        default_limit = 96 * 1024 * 1024
    else:                                      # v7x (64 MiB per TC)
        x_budget = 5 * 1024 * 1024
        default_limit = 44 * 1024 * 1024
    if vmem_limit_bytes is None:
        vmem_limit_bytes = default_limit

    row_bytes = T * D * itemsize

    # ---- batch block ----
    if block_b is None:
        block_b = max(1, x_budget // max(1, row_bytes))
    if block_b >= B:
        block_b = B                                  # full extent: no alignment constraint
    elif B <= 8:
        block_b = B
    else:
        block_b = max(8, (block_b // 8) * 8)         # output block sublane dim 8-aligned
    # Keep >= 2 batch grid steps for large B so the "parallel" axis can spread work
    # across v7x's two TensorCores (harmless on single-TC v5e/v6e).
    if block_b == B and B >= 16:
        block_b = max(8, ((B // 2) // 8) * 8)

    # ---- T block (online softmax tiling only when a full-T block would bust the budget) ----
    if block_t is None:
        if block_b * row_bytes <= x_budget:
            block_t = T
        else:
            target_t = max(8, x_budget // max(1, block_b * D * itemsize))
            block_t = _largest_aligned_divisor(T, target_t, align=8)
    block_t = min(block_t, T)
    if T % block_t:
        block_t = T   # a ragged T tile would contaminate the softmax; use the full extent

    # ---- explicit VMEM guard: double-buffered x block + ~2 f32-sized temps + acc/out ----
    x_block_bytes = block_b * block_t * D * itemsize
    est_bytes = 2 * x_block_bytes + 2 * block_b * block_t * D * 4 + 3 * block_b * D * 4
    assert est_bytes <= vmem_limit_bytes, (
        f"attentive_pooling: block ({block_b},{block_t},{D}) needs ~{est_bytes} B VMEM "
        f"> limit {vmem_limit_bytes} B; shrink block_b/block_t")

    grid = (pl.cdiv(B, block_b), pl.cdiv(T, block_t))

    return pl.pallas_call(
        _attentive_pool_kernel,
        out_shape=jax.ShapeDtypeStruct((B, D), x.dtype),
        grid=grid,
        in_specs=[
            pl.BlockSpec((block_b, block_t, D), lambda i, j: (i, j, 0)),  # x tile (lane-dense D)
            pl.BlockSpec((1, D), lambda i, j: (0, 0)),                    # weight row, resident
        ],
        out_specs=pl.BlockSpec((block_b, D), lambda i, j: (i, 0)),
        scratch_shapes=[
            pltpu.VMEM((block_b, 1), jnp.float32),   # running max m
            pltpu.VMEM((block_b, 1), jnp.float32),   # running denom l
            pltpu.VMEM((block_b, D), jnp.float32),   # running weighted sum
        ],
        compiler_params=pltpu.CompilerParams(
            dimension_semantics=("parallel", "arbitrary"),  # batch across TCs, T is a reduction
            vmem_limit_bytes=vmem_limit_bytes,
        ),
    )(x, w2)


if __name__ == "__main__":
    # Small shapes consistent with the module: batch=2, seq=8, input_dim=32.
    B, T, D = 2, 8, 32

    key = jax.random.PRNGKey(0)
    kx, kw, kb = jax.random.split(key, 3)
    x = jax.random.normal(kx, (B, T, D), dtype=jnp.float32)
    w = jax.random.normal(kw, (D,), dtype=jnp.float32) * (D ** -0.5)   # Linear(D, 1) weight
    b = jax.random.normal(kb, (), dtype=jnp.float32)                   # Linear(D, 1) bias (no-op)

    out = attentive_pooling(x, w, b)
    out = jax.block_until_ready(out)

    # Pure-JAX reference mirroring the PyTorch forward.
    scores = jnp.einsum("btd,d->bt", x, w) + b
    att = jax.nn.softmax(scores, axis=1)
    ref = jnp.sum(x * att[..., None], axis=1)

    assert out.shape == (B, D)
    # approx=True reciprocal is ~12-bit accurate -> compare at 2e-3.
    assert jnp.allclose(out, ref, atol=2e-3, rtol=2e-3), float(jnp.max(jnp.abs(out - ref)))

    print("KERNEL_OK")
</pallas_src>

<mosaic_0001>
module attributes {stable_mosaic.version = 11 : i64} {
  func.func @_attentive_pool_kernel(%arg0: i32, %arg1: i32, %arg2: memref<2x8x32xf32, #tpu.memory_space<vmem>>, %arg3: memref<1x32xf32, #tpu.memory_space<vmem>>, %arg4: memref<2x32xf32, #tpu.memory_space<vmem>>, %arg5: memref<2x1xf32, #tpu.memory_space<vmem>>, %arg6: memref<2x1xf32, #tpu.memory_space<vmem>>, %arg7: memref<2x32xf32, #tpu.memory_space<vmem>>) attributes {dimension_semantics = [#tpu.dimension_semantics<parallel>, #tpu.dimension_semantics<arbitrary>], iteration_bounds = array<i64: 1, 1>, scalar_prefetch = 0 : i64, scratch_operands = 3 : i64, tpu.core_type = #tpu.core_type<tc>, window_params = [{transform_indices = @transform_0, window_bounds = array<i64: 2, 8, 32>}, {pipeline_mode = #tpu.pipeline_mode<synchronous>, transform_indices = @transform_1, window_bounds = array<i64: 1, 32>}, {transform_indices = @transform_2, window_bounds = array<i64: 2, 32>}]} {
    %c0_i32 = arith.constant 0 : i32
    %0 = arith.cmpi eq, %arg1, %c0_i32 : i32
    %1 = arith.extui %0 : i1 to i32
    %c0_i32_0 = arith.constant 0 : i32
    %2 = arith.cmpi ne, %1, %c0_i32_0 : i32
    scf.if %2 {
      %cst_22 = arith.constant 0xFF800000 : f32
      %36 = vector.broadcast %cst_22 : f32 to vector<2x1xf32>
      %c0_23 = arith.constant 0 : index
      %c0_24 = arith.constant 0 : index
      %37 = vector.load %arg5[%c0_23, %c0_24] : memref<2x1xf32, #tpu.memory_space<vmem>>, vector<2x1xf32>
      tpu.vector_store %arg5[%c0_23, %c0_24], %36 {strides = array<i32>} : memref<2x1xf32, #tpu.memory_space<vmem>>, vector<2x1xf32>,
      %cst_25 = arith.constant 0.000000e+00 : f32
      %38 = vector.broadcast %cst_25 : f32 to vector<2x1xf32>
      %c0_26 = arith.constant 0 : index
      %c0_27 = arith.constant 0 : index
      %39 = vector.load %arg6[%c0_26, %c0_27] : memref<2x1xf32, #tpu.memory_space<vmem>>, vector<2x1xf32>
      tpu.vector_store %arg6[%c0_26, %c0_27], %38 {strides = array<i32>} : memref<2x1xf32, #tpu.memory_space<vmem>>, vector<2x1xf32>,
      %cst_28 = arith.constant 0.000000e+00 : f32
      %40 = vector.broadcast %cst_28 : f32 to vector<2x32xf32>
      %c0_29 = arith.constant 0 : index
      %c0_30 = arith.constant 0 : index
      %41 = vector.load %arg7[%c0_29, %c0_30] : memref<2x32xf32, #tpu.memory_space<vmem>>, vector<2x32xf32>
      tpu.vector_store %arg7[%c0_29, %c0_30], %40 {strides = array<i32>} : memref<2x32xf32, #tpu.memory_space<vmem>>, vector<2x32xf32>,
    } else {
    }
    %c0 = arith.constant 0 : index
    %c0_1 = arith.constant 0 : index
    %c0_2 = arith.constant 0 : index
    %3 = vector.load %arg2[%c0, %c0_1, %c0_2] : memref<2x8x32xf32, #tpu.memory_space<vmem>>, vector<2x8x32xf32>
    %c0_3 = arith.constant 0 : index
    %c0_4 = arith.constant 0 : index
    %4 = vector.load %arg3[%c0_3, %c0_4] : memref<1x32xf32, #tpu.memory_space<vmem>>, vector<1x32xf32>
    %5 = vector.shape_cast %4 : vector<1x32xf32> to vector<1x1x32xf32>
    %6 = vector.broadcast %5 : vector<1x1x32xf32> to vector<2x8x32xf32>
    %7 = arith.mulf %3, %6 : vector<2x8x32xf32>
    %cst = arith.constant dense<0.000000e+00> : vector<2x8xf32>
    %8 = vector.multi_reduction <add>, %7, %cst [2] : vector<2x8x32xf32> to vector<2x8xf32>
    %9 = vector.shape_cast %8 : vector<2x8xf32> to vector<2x8x1xf32>
    %c0_5 = arith.constant 0 : index
    %c0_6 = arith.constant 0 : index
    %10 = vector.load %arg5[%c0_5, %c0_6] : memref<2x1xf32, #tpu.memory_space<vmem>>, vector<2x1xf32>
    %cst_7 = arith.constant dense<0xFF800000> : vector<2x1xf32>
    %11 = vector.multi_reduction <maximumf>, %9, %cst_7 [1] : vector<2x8x1xf32> to vector<2x1xf32>
    %12 = arith.maximumf %10, %11 : vector<2x1xf32>
    %13 = arith.subf %10, %12 : vector<2x1xf32>
    %14 = math.exp %13 : vector<2x1xf32>
    %15 = vector.shape_cast %12 : vector<2x1xf32> to vector<2x1x1xf32>
    %16 = vector.broadcast %15 : vector<2x1x1xf32> to vector<2x8x1xf32>
    %17 = arith.subf %9, %16 : vector<2x8x1xf32>
    %18 = math.exp %17 : vector<2x8x1xf32>
    %c0_8 = arith.constant 0 : index
    %c0_9 = arith.constant 0 : index
    %19 = vector.load %arg6[%c0_8, %c0_9] : memref<2x1xf32, #tpu.memory_space<vmem>>, vector<2x1xf32>
    %20 = arith.mulf %14, %19 : vector<2x1xf32>
    %cst_10 = arith.constant dense<0.000000e+00> : vector<2x1xf32>
    %21 = vector.multi_reduction <add>, %18, %cst_10 [1] : vector<2x8x1xf32> to vector<2x1xf32>
    %22 = arith.addf %20, %21 : vector<2x1xf32>
    %c0_11 = arith.constant 0 : index
    %c0_12 = arith.constant 0 : index
    %23 = vector.load %arg6[%c0_11, %c0_12] : memref<2x1xf32, #tpu.memory_space<vmem>>, vector<2x1xf32>
    tpu.vector_store %arg6[%c0_11, %c0_12], %22 {strides = array<i32>} : memref<2x1xf32, #tpu.memory_space<vmem>>, vector<2x1xf32>,
    %24 = vector.broadcast %18 : vector<2x8x1xf32> to vector<2x8x32xf32>
    %25 = arith.mulf %3, %24 : vector<2x8x32xf32>
    %cst_13 = arith.constant dense<0.000000e+00> : vector<2x32xf32>
    %26 = vector.multi_reduction <add>, %25, %cst_13 [1] : vector<2x8x32xf32> to vector<2x32xf32>
    %c0_14 = arith.constant 0 : index
    %c0_15 = arith.constant 0 : index
    %27 = vector.load %arg7[%c0_14, %c0_15] : memref<2x32xf32, #tpu.memory_space<vmem>>, vector<2x32xf32>
    %28 = vector.broadcast %14 : vector<2x1xf32> to vector<2x32xf32>
    %29 = arith.mulf %28, %27 : vector<2x32xf32>
    %30 = arith.addf %29, %26 : vector<2x32xf32>
    %c0_16 = arith.constant 0 : index
    %c0_17 = arith.constant 0 : index
    %31 = vector.load %arg7[%c0_16, %c0_17] : memref<2x32xf32, #tpu.memory_space<vmem>>, vector<2x32xf32>
    tpu.vector_store %arg7[%c0_16, %c0_17], %30 {strides = array<i32>} : memref<2x32xf32, #tpu.memory_space<vmem>>, vector<2x32xf32>,
    %c0_18 = arith.constant 0 : index
    %c0_19 = arith.constant 0 : index
    %32 = vector.load %arg5[%c0_18, %c0_19] : memref<2x1xf32, #tpu.memory_space<vmem>>, vector<2x1xf32>
    tpu.vector_store %arg5[%c0_18, %c0_19], %12 {strides = array<i32>} : memref<2x1xf32, #tpu.memory_space<vmem>>, vector<2x1xf32>,
    %c0_i32_20 = arith.constant 0 : i32
    %33 = arith.cmpi eq, %arg1, %c0_i32_20 : i32
    %34 = arith.extui %33 : i1 to i32
    %c0_i32_21 = arith.constant 0 : i32
    %35 = arith.cmpi ne, %34, %c0_i32_21 : i32
    scf.if %35 {
      %c0_22 = arith.constant 0 : index
      %c0_23 = arith.constant 0 : index
      %36 = vector.load %arg6[%c0_22, %c0_23] : memref<2x1xf32, #tpu.memory_space<vmem>>, vector<2x1xf32>
      %37 = tpu.reciprocal %36 {approx = true} : vector<2x1xf32> -> vector<2x1xf32>
      %c0_24 = arith.constant 0 : index
      %c0_25 = arith.constant 0 : index
      %38 = vector.load %arg7[%c0_24, %c0_25] : memref<2x32xf32, #tpu.memory_space<vmem>>, vector<2x32xf32>
      %39 = vector.broadcast %37 : vector<2x1xf32> to vector<2x32xf32>
      %40 = arith.mulf %38, %39 : vector<2x32xf32>
      %c0_26 = arith.constant 0 : index
      %c0_27 = arith.constant 0 : index
      %41 = vector.load %arg4[%c0_26, %c0_27] : memref<2x32xf32, #tpu.memory_space<vmem>>, vector<2x32xf32>
      tpu.vector_store %arg4[%c0_26, %c0_27], %40 {strides = array<i32>} : memref<2x32xf32, #tpu.memory_space<vmem>>, vector<2x32xf32>,
    } else {
    }
    return
  }
  func.func @transform_0(%arg0: i32, %arg1: i32) -> (i32, i32, i32) {
    %c0_i32 = arith.constant 0 : i32
    %c0_i32_0 = arith.constant 0 : i32
    return %arg0, %arg1, %c0_i32 : i32, i32, i32
  }
  func.func @transform_1(%arg0: i32, %arg1: i32) -> (i32, i32) {
    %c0_i32 = arith.constant 0 : i32
    %c0_i32_0 = arith.constant 0 : i32
    %c0_i32_1 = arith.constant 0 : i32
    return %c0_i32, %c0_i32_0 : i32, i32
  }
  func.func @transform_2(%arg0: i32, %arg1: i32) -> (i32, i32) {
    %c0_i32 = arith.constant 0 : i32
    %c0_i32_0 = arith.constant 0 : i32
    return %arg0, %c0_i32 : i32, i32
  }
}

</mosaic_0001>

<llo_original>
// kernel: tpu_custom_call.1
$region0: #{tpu_custom_call.1}
  #allocation0 [shape = 'u32[]', space=smem, size = 0x4, offset = 0x4, fixed_abs, tag = 'smem constant byte address 0x4 - core index']
  #allocation1 [shape = 'u32[72,128]{1,0:T(1,128)}', space=vmem, size = 0x9000, scoped, tag = 'internal scratch']
  #allocation2 [shape = 'f32[2,1]{1,0:T(2,128)}', space=vmem, size = 0x400, scoped, tag = 'scratch operand']
  #allocation3 [shape = 'f32[2,1]{1,0:T(2,128)}', space=vmem, size = 0x400, scoped, tag = 'scratch operand']
  #allocation4 [shape = 'f32[2,32]{1,0:T(2,128)}', space=vmem, size = 0x400, scoped, tag = 'scratch operand']
  %s0 = inlined_call_operand.hbm [shape: f32[2,8,32], index: 0, kind: input, shape index: {}]
  %s1 = inlined_call_operand.hbm [shape: f32[1,32], index: 1, kind: input, shape index: {}]
  %s2 = inlined_call_operand.hbm [shape: f32[2,32], index: 2, kind: output, shape index: {}]
  %s3 = sld [smem:[#allocation0]]
  $region34: #{tpu_custom_call.1} parent=0
    _
  %s5 = ssub.s32 1, %s3
  %s6 = scalar_select 0, %s5, %s3
  $region1: #{tpu_custom_call.1} parent=0
    #allocation5 [shape = 'u8[8192]{0}', space=vmem, size = 0x2000, scoped, tag = 'input window, operand 0, single buffered']
    #allocation6 [shape = 's32[1]{0}', space=sflag, size = 0x4, scoped, tag = 'scoped memory for tpu_custom_call.1']
    #allocation7 [shape = 's32[1]{0}', space=sflag, size = 0x4, scoped, tag = 'scoped memory for tpu_custom_call.1']
    #allocation8 [shape = 'u8[512]{0}', space=vmem, size = 0x400, scoped, tag = 'input window, operand 1, single buffered']
    #allocation9 [shape = 's32[1]{0}', space=sflag, size = 0x4, scoped, tag = 'scoped memory for tpu_custom_call.1']
    #allocation10 [shape = 'u8[1024]{0}', space=vmem, size = 0x400, scoped, tag = 'output window, operand 0, single buffered']
    %7 = vsyncpa [#allocation6], 0
    %8 = vsyncpa [#allocation9], 0
    %9 = vsyncpa [#allocation7], 0
    // Predicated region
    $region2: #{tpu_custom_call.1} parent=1 // pred_check
      _
    $region3: #{tpu_custom_call.1} parent=1 // pred_check_branch
      %11 = sbr.rel (0) target = $region5
    $region4: #{tpu_custom_call.1} parent=1 // pred_region
      %13 = vsyncadd [#allocation6], 0
      %s14 = sshll.u32 %s0, 4
      %s15 = int_to_ptr.hbm [resolvable:$true] %s14
      %s16 = sshll.u32 [#allocation5], 4
      %s17 = int_to_ptr.vmem [resolvable:$true] %s16
      %22 = dma.hbm_to_vmem [thread:$0]  %s15, 256, %s17, [#allocation6], 128, 128, 8
    $region5: #{tpu_custom_call.1} parent=1 // pred_fallthru
      _
    // Predicated region
    $region6: #{tpu_custom_call.1} parent=1 // pred_check
      _
    $region7: #{tpu_custom_call.1} parent=1 // pred_check_branch
      %24 = sbr.rel (0) target = $region9
    $region8: #{tpu_custom_call.1} parent=1 // pred_region
      %26 = vsyncadd [#allocation9], 0
      %s28 = sshll.u32 %s1, 4
      %s29 = int_to_ptr.hbm [resolvable:$true] %s28
      %s30 = sshll.u32 [#allocation8], 4
      %s31 = int_to_ptr.vmem [resolvable:$true] %s30
      %33 = dma.hbm_to_vmem [thread:$0]  %s29, 16, %s31, [#allocation9]
    $region9: #{tpu_custom_call.1} parent=1 // pred_fallthru
      _
    // Predicated region
    $region10: #{tpu_custom_call.1} parent=1 // pred_check
      _
    $region11: #{tpu_custom_call.1} parent=1 // pred_check_branch
      %35 = sbr.rel (0) target = $region13
    $region12: #{tpu_custom_call.1} parent=1 // pred_region
      %37 = dma.done [#allocation6], 256
    $region13: #{tpu_custom_call.1} parent=1 // pred_fallthru
      _
    // Predicated region
    $region14: #{tpu_custom_call.1} parent=1 // pred_check
      _
    $region15: #{tpu_custom_call.1} parent=1 // pred_check_branch
      %39 = sbr.rel (0) target = $region17
    $region16: #{tpu_custom_call.1} parent=1 // pred_region
      %41 = dma.done [#allocation9], 16
    $region17: #{tpu_custom_call.1} parent=1 // pred_fallthru
      _
    %p42 = scmp.eq.s32.totalorder 0, 0
    // Predicated region
    $region18: #{tpu_custom_call.1} parent=1 // pred_check
      %p43 = pneg %p42
    $region19: #{tpu_custom_call.1} parent=1 // pred_check_branch
      %45 = sbr.rel (%p43) target = $region21
    $region20: #{tpu_custom_call.1} parent=1 // pred_region
      %vm46 = vcmask 1024
      %47 = vst.msk [vmem:[#allocation2] sm:$0x3] %vm46, -inf
      %48 = vst.msk [vmem:[#allocation3] sm:$0x3] %vm46, 0.0
      %vm49 = vcmask 254976
      %50 = vst.msk [vmem:[#allocation4] sm:$0x3] %vm49, 0.0
    $region21: #{tpu_custom_call.1} parent=1 // pred_fallthru
      _
    %v51 = vld [vmem:[#allocation5] sm:$0xff]
    %v52 = vld [vmem:[#allocation5 + $0x8] sm:$0xff]
    %v53 = vld [vmem:[#allocation8] sm:$0x1]
    %v55 = vperm.slane %v53, 0
    %v57 = vmul.f32 %v51, %v55
    %v58 = vmul.f32 %v52, %v55
    %vm59 = vcmask 261120
    %v60 = vsel %vm59, %v57, 0.0
    %61 = vadd.xlane.f32.xlu0 %v60
    %v62 = vpop.xlane.xlu0 %61
    %v63 = vsel %vm59, %v58, 0.0
    %64 = vadd.xlane.f32.xlu0 %v63
    %v65 = vpop.xlane.xlu0 %64
    %v66 = vld [vmem:[#allocation2] sm:$0x3]
    %v67 = vrot.slane %v62, 4
    %v68 = vmax.f32 %v62, %v67
    %v69 = vrot.slane %v68, 2
    %v70 = vmax.f32 %v68, %v69
    %v71 = vrot.slane %v70, 1
    %v72 = vmax.f32 %v70, %v71
    %v73 = vrot.slane %v65, 4
    %v74 = vmax.f32 %v65, %v73
    %v75 = vrot.slane %v74, 2
    %v76 = vmax.f32 %v74, %v75
    %v77 = vrot.slane %v76, 1
    %v78 = vmax.f32 %v76, %v77
    %vm81 = vcmask 1041409
    %v82 = vsel %vm81, %v78, %v72
    %v84 = vmax.f32 %v66, %v82
    %v85 = vsub.f32 %v66, %v84
    %v86 = vmul.f32 %v85, 1.442695
    %v87 = vpow.pop %v86
    %v89 = vrot.slane %v84, 1
    %v90 = vperm.slane %v84, 0
    %v91 = vperm.slane %v89, 0
    %v94 = vsub.f32 %v62, %v90
    %v95 = vsub.f32 %v65, %v91
    %v96 = vmul.f32 %v94, 1.442695
    %v97 = vpow.pop %v96
    %v98 = vmul.f32 %v95, 1.442695
    %v99 = vpow.pop %v98
    %v100 = vld [vmem:[#allocation3] sm:$0x3]
    %v101 = vmul.f32 %v87, %v100
    %vm102 = vcmask 7168
    %v103 = vsel %vm102, %v97, 0.0
    %v104 = vrot.slane %v103, 4
    %v105 = vadd.f32 %v103, %v104
    %v106 = vrot.slane %v105, 2
    %v107 = vadd.f32 %v105, %v106
    %v108 = vrot.slane %v107, 1
    %v109 = vadd.f32 %v107, %v108
    %v110 = vsel %vm102, %v99, 0.0
    %v111 = vrot.slane %v110, 4
    %v112 = vadd.f32 %v110, %v111
    %v113 = vrot.slane %v112, 2
    %v114 = vadd.f32 %v112, %v113
    %v115 = vrot.slane %v114, 1
    %v116 = vadd.f32 %v114, %v115
    %v119 = vsel %vm81, %v116, %v109
    %v121 = vadd.f32 %v101, %v119
    %vm122 = vcmask 1024
    %123 = vst.msk [vmem:[#allocation3] sm:$0x3] %vm122, %v121
    %125 = vset.pattern.permute.xlu0 0
    %126 = vperm.xlu0 %125, %v97
    %v127 = vpop.permute.xlu0 %126
    %130 = vset.pattern.permute.xlu0 0
    %131 = vperm.xlu0 %130, %v99
    %v132 = vpop.permute.xlu0 %131
    %v134 = vmul.f32 %v51, %v127
    %v135 = vmul.f32 %v52, %v132
    %v136 = vsel %vm59, %v134, 0.0
    %v137 = vrot.slane %v136, 4
    %v138 = vadd.f32 %v136, %v137
    %v139 = vrot.slane %v138, 2
    %v140 = vadd.f32 %v138, %v139
    %v141 = vrot.slane %v140, 1
    %v142 = vadd.f32 %v140, %v141
    %v143 = vsel %vm59, %v135, 0.0
    %v144 = vrot.slane %v143, 4
    %v145 = vadd.f32 %v143, %v144
    %v146 = vrot.slane %v145, 2
    %v147 = vadd.f32 %v145, %v146
    %v148 = vrot.slane %v147, 1
    %v149 = vadd.f32 %v147, %v148
    %v150 = vld [vmem:[#allocation4] sm:$0x3]
    %152 = vset.pattern.permute.xlu0 0
    %153 = vperm.xlu0 %152, %v87
    %v154 = vpop.permute.xlu0 %153
    %v156 = vmul.f32 %v154, %v150
    %v159 = vsel %vm81, %v149, %v142
    %v161 = vadd.f32 %v156, %v159
    %vm162 = vcmask 254976
    %163 = vst.msk [vmem:[#allocation4] sm:$0x3] %vm162, %v161
    %164 = vst.msk [vmem:[#allocation2] sm:$0x3] %vm122, %v84
    // Predicated region
    $region22: #{tpu_custom_call.1} parent=1 // pred_check
      %p165 = pneg %p42
    $region23: #{tpu_custom_call.1} parent=1 // pred_check_branch
      %167 = sbr.rel (%p165) target = $region25
    $region24: #{tpu_custom_call.1} parent=1 // pred_region
      %v168 = vld [vmem:[#allocation3] sm:$0x3]
      %v169 = vrcp.pop %v168
      %v170 = vld [vmem:[#allocation4] sm:$0x3]
      %172 = vset.pattern.permute.xlu0 0
      %173 = vperm.xlu0 %172, %v169
      %v174 = vpop.permute.xlu0 %173
      %v176 = vmul.f32 %v170, %v174
      %177 = vst.msk [vmem:[#allocation10] sm:$0x3] %vm162, %v176
    $region25: #{tpu_custom_call.1} parent=1 // pred_fallthru
      _
    // Predicated region
    $region26: #{tpu_custom_call.1} parent=1 // pred_check
      _
    $region27: #{tpu_custom_call.1} parent=1 // pred_check_branch
      %179 = sbr.rel (0) target = $region29
    $region28: #{tpu_custom_call.1} parent=1 // pred_region
      %181 = vsyncadd [#allocation7], 0
      %s183 = sshll.u32 [#allocation10], 4
      %s184 = int_to_ptr.vmem [resolvable:$true] %s183
      %s185 = sshll.u32 %s2, 4
      %s186 = int_to_ptr.hbm [resolvable:$true] %s185
      %188 = dma.vmem_to_hbm [thread:$0]  %s184, 32, %s186, [#allocation7]
    $region29: #{tpu_custom_call.1} parent=1 // pred_fallthru
      _
    // Predicated region
    $region30: #{tpu_custom_call.1} parent=1 // pred_check
      _
    $region31: #{tpu_custom_call.1} parent=1 // pred_check_branch
      %190 = sbr.rel (0) target = $region33
    $region32: #{tpu_custom_call.1} parent=1 // pred_region
      %192 = dma.done [#allocation7], 32
    $region33: #{tpu_custom_call.1} parent=1 // pred_fallthru
      _
    %193 = vsyncpa [#allocation6], 1
    %194 = vsyncpa [#allocation9], 1
    %195 = vsyncpa [#allocation7], 1

</llo_original>
